<compile_context>
chip_gen: v7x
topology: tpu7x:2x2x1
jax: 0.10.0
libtpu: 0.0.40
codegen_flags: <defaults>
</compile_context>

<pallas_src>
import functools
import math

import jax
import jax.numpy as jnp
from jax.experimental import pallas as pl
from jax.experimental.pallas import tpu as pltpu


def _round_up(x: int, m: int) -> int:
    return ((x + m - 1) // m) * m


def _proxy_anchor_kernel(dist_ref, tgt_ref, out_ref, pos_acc, neg_acc, *,
                         alpha, delta, b_tile, b_actual, b_padded):
    bi = pl.program_id(1)                      # batch-tile index (reduction axis)

    @pl.when(bi == 0)
    def _init():
        pos_acc[...] = jnp.zeros_like(pos_acc)
        neg_acc[...] = jnp.zeros_like(neg_acc)

    d = dist_ref[...].astype(jnp.float32)
    t = tgt_ref[...].astype(jnp.float32)       # pos_target
    neg_t = 1.0 - t                            # neg_target

    if b_padded != b_actual:
        # Zero-padded tail rows of the batch would otherwise contribute
        # exp(alpha*delta) to every negative column -> mask them out.
        rows = jax.lax.broadcasted_iota(jnp.int32, d.shape, 0) + bi * b_tile
        neg_t = jnp.where(rows < b_actual, neg_t, 0.0)

    # Single exp per element (EUP); recover the positive branch via a
    # reciprocal:  exp(-a*(d-delta)) == exp(2*a*delta) / exp(a*(d+delta)).
    e = jnp.exp(alpha * (d + delta))
    pos_scale = math.exp(2.0 * alpha * delta)
    neg_mat = neg_t * e
    # exact reciprocal keeps ~ulp-level agreement with the reference;
    # pl.reciprocal(e, approx=True) is a further EUP-saving knob (~1e-4 rel err).
    pos_mat = t * (pos_scale * pl.reciprocal(e))

    # Fold the b_tile rows into 8 sublanes with plain VALU adds; the
    # cross-sublane (XLU) reduction happens only once per C tile (epilogue).
    p8 = pos_mat[0:8, :]
    n8 = neg_mat[0:8, :]
    for c in range(1, b_tile // 8):
        sl = slice(c * 8, (c + 1) * 8)
        p8 = p8 + pos_mat[sl, :]
        n8 = n8 + neg_mat[sl, :]
    pos_acc[...] += p8
    neg_acc[...] += n8

    @pl.when(bi == pl.num_programs(1) - 1)
    def _finalize():
        pos_col = jnp.sum(pos_acc[...], axis=0, keepdims=True)   # (1, c_tile)
        neg_col = jnp.sum(neg_acc[...], axis=0, keepdims=True)   # (1, c_tile)
        out_ref[0:1, :] = jnp.log(1.0 + pos_col)
        out_ref[1:2, :] = jnp.log(1.0 + neg_col)


def proxy_anchor_loss(dist_mat: jax.Array, target: jax.Array, *,
                      scale: float = 16.0, margin: float = 0.1,
                      b_tile: int = 256, c_tile: int = 2048) -> jax.Array:
    """Forward pass of the PyTorch proxy_anchor_loss module."""
    B, C = dist_mat.shape
    assert target.shape == (B, C)

    # Align tiles: sublane axis multiple of 8, lane axis multiple of 128, and
    # never larger than the (padded) problem.
    b_tile = _round_up(max(8, min(b_tile, _round_up(B, 8))), 8)
    c_tile = _round_up(max(128, min(c_tile, _round_up(C, 128))), 128)
    Bp = _round_up(B, b_tile)
    Cp = _round_up(C, c_tile)

    d = dist_mat
    t = target
    if (Bp, Cp) != (B, C):
        d = jnp.pad(d, ((0, Bp - B), (0, Cp - C)))
        t = jnp.pad(t, ((0, Bp - B), (0, Cp - C)))

    nb = Bp // b_tile
    nc = Cp // c_tile

    kernel = functools.partial(
        _proxy_anchor_kernel,
        alpha=float(scale), delta=float(margin),
        b_tile=b_tile, b_actual=B, b_padded=Bp)

    logs = pl.pallas_call(
        kernel,
        out_shape=jax.ShapeDtypeStruct((2, Cp), jnp.float32),
        grid_spec=pltpu.PrefetchScalarGridSpec(
            num_scalar_prefetch=0,
            grid=(nc, nb),                                  # reduction axis innermost
            in_specs=[
                pl.BlockSpec((b_tile, c_tile), lambda ci, bi: (bi, ci)),  # dist
                pl.BlockSpec((b_tile, c_tile), lambda ci, bi: (bi, ci)),  # target
            ],
            out_specs=pl.BlockSpec((2, c_tile), lambda ci, bi: (0, ci)),
            scratch_shapes=[
                pltpu.VMEM((8, c_tile), jnp.float32),       # pos partial sums
                pltpu.VMEM((8, c_tile), jnp.float32),       # neg partial sums
            ]),
        compiler_params=pltpu.CompilerParams(
            dimension_semantics=("parallel", "arbitrary"),  # C tiles split on v7x megacore
            vmem_limit_bytes=32 * 1024 * 1024),
    )(d, t)

    logs = logs[:, :C]                                      # drop lane padding

    # 1 / |torch.unique(target)|: for the 0/1 membership matrices this loss is
    # used with, the distinct-value count is presence(0) + presence(1) — no
    # O(B*C log(B*C)) sort needed.
    # TODO(synk): a general (non-{0,1}) target would need a true distinct-value
    # count (sort-based) to match torch.unique exactly.
    tf = target.astype(jnp.float32)
    num_unique = (jnp.any(tf == 0.0).astype(jnp.float32)
                  + jnp.any(tf == 1.0).astype(jnp.float32))

    pos_term = jnp.sum(logs[0]) / num_unique
    neg_term = jnp.sum(logs[1]) / jnp.float32(B)
    return pos_term + neg_term


def _reference(dist_mat, target, scale=16.0, margin=0.1):
    # Pure-JAX reference mirroring the PyTorch code line by line.
    pos_target = target.astype(jnp.float32)
    neg_target = 1.0 - pos_target
    d = dist_mat.astype(jnp.float32)
    pos_mat = jnp.exp(-scale * (d - margin)) * pos_target
    neg_mat = jnp.exp(scale * (d + margin)) * neg_target
    flat = jnp.sort(pos_target.reshape(-1))
    num_unique = 1 + jnp.sum(flat[1:] != flat[:-1])
    pos_term = 1.0 / num_unique * jnp.sum(jnp.log(1.0 + jnp.sum(pos_mat, axis=0)))
    neg_term = 1.0 / dist_mat.shape[0] * jnp.sum(jnp.log(1.0 + jnp.sum(neg_mat, axis=0)))
    return pos_term + neg_term


if __name__ == "__main__":
    key = jax.random.PRNGKey(0)
    k1, k2, k3, k4 = jax.random.split(key, 4)

    # Case 1: small, single grid step; exercises batch (12->16) and class
    # (20->128) padding.  One-hot target shipped as bf16 (half the HBM bytes).
    B1, C1 = 12, 20
    d1 = jax.random.uniform(k1, (B1, C1), jnp.float32, minval=-0.5, maxval=0.5)
    t1 = jax.nn.one_hot(jax.random.randint(k2, (B1,), 0, C1), C1,
                        dtype=jnp.bfloat16)
    loss1 = proxy_anchor_loss(d1, t1)
    ref1 = _reference(d1, t1)

    # Case 2: multi-tile grid (2 C-tiles x 3 B-tiles) with ragged edges on both
    # axes, forcing the accumulate-across-B-tiles + pl.when init/finalize path.
    B2, C2 = 40, 200
    d2 = jax.random.uniform(k3, (B2, C2), jnp.float32, minval=-0.5, maxval=0.5)
    t2 = jax.nn.one_hot(jax.random.randint(k4, (B2,), 0, C2), C2,
                        dtype=jnp.bfloat16)
    loss2 = proxy_anchor_loss(d2, t2, b_tile=16, c_tile=128)
    ref2 = _reference(d2, t2)

    jax.block_until_ready((loss1, loss2))
    assert jnp.allclose(loss1, ref1, rtol=1e-4, atol=1e-4), (loss1, ref1)
    assert jnp.allclose(loss2, ref2, rtol=1e-4, atol=1e-4), (loss2, ref2)
    print("KERNEL_OK")
</pallas_src>

<mosaic_0001>
module attributes {stable_mosaic.version = 11 : i64} {
  func.func @_proxy_anchor_kernel(%arg0: i32, %arg1: i32, %arg2: memref<16x128xf32, #tpu.memory_space<vmem>>, %arg3: memref<16x128xbf16, #tpu.memory_space<vmem>>, %arg4: memref<2x128xf32, #tpu.memory_space<vmem>>, %arg5: memref<8x128xf32, #tpu.memory_space<vmem>>, %arg6: memref<8x128xf32, #tpu.memory_space<vmem>>) attributes {dimension_semantics = [#tpu.dimension_semantics<parallel>, #tpu.dimension_semantics<arbitrary>], iteration_bounds = array<i64: 1, 1>, scalar_prefetch = 0 : i64, scratch_operands = 2 : i64, tpu.core_type = #tpu.core_type<tc>, window_params = [{transform_indices = @transform_0, window_bounds = array<i64: 16, 128>}, {transform_indices = @transform_1, window_bounds = array<i64: 16, 128>}, {transform_indices = @transform_2, window_bounds = array<i64: 2, 128>}]} {
    %c0_i32 = arith.constant 0 : i32
    %0 = arith.cmpi eq, %arg1, %c0_i32 : i32
    %1 = arith.extui %0 : i1 to i32
    %c0_i32_0 = arith.constant 0 : i32
    %2 = arith.cmpi ne, %1, %c0_i32_0 : i32
    scf.if %2 {
      %cst_18 = arith.constant 0.000000e+00 : f32
      %41 = vector.broadcast %cst_18 : f32 to vector<8x128xf32>
      %c0_19 = arith.constant 0 : index
      %c0_20 = arith.constant 0 : index
      %42 = vector.load %arg5[%c0_19, %c0_20] : memref<8x128xf32, #tpu.memory_space<vmem>>, vector<8x128xf32>
      tpu.vector_store %arg5[%c0_19, %c0_20], %41 {strides = array<i32>} : memref<8x128xf32, #tpu.memory_space<vmem>>, vector<8x128xf32>,
      %cst_21 = arith.constant 0.000000e+00 : f32
      %43 = vector.broadcast %cst_21 : f32 to vector<8x128xf32>
      %c0_22 = arith.constant 0 : index
      %c0_23 = arith.constant 0 : index
      %44 = vector.load %arg6[%c0_22, %c0_23] : memref<8x128xf32, #tpu.memory_space<vmem>>, vector<8x128xf32>
      tpu.vector_store %arg6[%c0_22, %c0_23], %43 {strides = array<i32>} : memref<8x128xf32, #tpu.memory_space<vmem>>, vector<8x128xf32>,
    } else {
    }
    %c0 = arith.constant 0 : index
    %c0_1 = arith.constant 0 : index
    %3 = vector.load %arg2[%c0, %c0_1] : memref<16x128xf32, #tpu.memory_space<vmem>>, vector<16x128xf32>
    %c0_2 = arith.constant 0 : index
    %c0_3 = arith.constant 0 : index
    %4 = vector.load %arg3[%c0_2, %c0_3] : memref<16x128xbf16, #tpu.memory_space<vmem>>, vector<16x128xbf16>
    %5 = arith.extf %4 : vector<16x128xbf16> to vector<16x128xf32>
    %cst = arith.constant 1.000000e+00 : f32
    %6 = vector.broadcast %cst : f32 to vector<16x128xf32>
    %7 = arith.subf %6, %5 : vector<16x128xf32>
    %8 = tpu.iota {dimensions = array<i32: 0>} : vector<16x128xi32>
    %c16_i32 = arith.constant 16 : i32
    %9 = arith.muli %arg1, %c16_i32 : i32
    %10 = vector.broadcast %9 : i32 to vector<16x128xi32>
    %11 = arith.addi %8, %10 : vector<16x128xi32>
    %c12_i32 = arith.constant 12 : i32
    %12 = vector.broadcast %c12_i32 : i32 to vector<16x128xi32>
    %13 = arith.cmpi slt, %11, %12 : vector<16x128xi32>
    %cst_4 = arith.constant 0.000000e+00 : f32
    %14 = vector.broadcast %cst_4 : f32 to vector<16x128xf32>
    %15 = arith.select %13, %7, %14 : vector<16x128xi1>, vector<16x128xf32>
    %cst_5 = arith.constant 1.000000e-01 : f32
    %16 = vector.broadcast %cst_5 : f32 to vector<16x128xf32>
    %17 = arith.addf %3, %16 : vector<16x128xf32>
    %cst_6 = arith.constant 1.600000e+01 : f32
    %18 = vector.broadcast %cst_6 : f32 to vector<16x128xf32>
    %19 = arith.mulf %18, %17 : vector<16x128xf32>
    %20 = math.exp %19 : vector<16x128xf32>
    %21 = arith.mulf %15, %20 : vector<16x128xf32>
    %22 = tpu.reciprocal %20 : vector<16x128xf32> -> vector<16x128xf32>
    %cst_7 = arith.constant 24.5325298 : f32
    %23 = vector.broadcast %cst_7 : f32 to vector<16x128xf32>
    %24 = arith.mulf %23, %22 : vector<16x128xf32>
    %25 = arith.mulf %5, %24 : vector<16x128xf32>
    %26 = vector.extract_strided_slice %25 {offsets = [0, 0], sizes = [8, 128], strides = [1, 1]} : vector<16x128xf32> to vector<8x128xf32>
    %27 = vector.extract_strided_slice %21 {offsets = [0, 0], sizes = [8, 128], strides = [1, 1]} : vector<16x128xf32> to vector<8x128xf32>
    %28 = vector.extract_strided_slice %25 {offsets = [8, 0], sizes = [8, 128], strides = [1, 1]} : vector<16x128xf32> to vector<8x128xf32>
    %29 = arith.addf %26, %28 : vector<8x128xf32>
    %30 = vector.extract_strided_slice %21 {offsets = [8, 0], sizes = [8, 128], strides = [1, 1]} : vector<16x128xf32> to vector<8x128xf32>
    %31 = arith.addf %27, %30 : vector<8x128xf32>
    %c0_8 = arith.constant 0 : index
    %c0_9 = arith.constant 0 : index
    %32 = vector.load %arg5[%c0_8, %c0_9] : memref<8x128xf32, #tpu.memory_space<vmem>>, vector<8x128xf32>
    %33 = arith.addf %32, %29 : vector<8x128xf32>
    %c0_10 = arith.constant 0 : index
    %c0_11 = arith.constant 0 : index
    %34 = vector.load %arg5[%c0_10, %c0_11] : memref<8x128xf32, #tpu.memory_space<vmem>>, vector<8x128xf32>
    tpu.vector_store %arg5[%c0_10, %c0_11], %33 {strides = array<i32>} : memref<8x128xf32, #tpu.memory_space<vmem>>, vector<8x128xf32>,
    %c0_12 = arith.constant 0 : index
    %c0_13 = arith.constant 0 : index
    %35 = vector.load %arg6[%c0_12, %c0_13] : memref<8x128xf32, #tpu.memory_space<vmem>>, vector<8x128xf32>
    %36 = arith.addf %35, %31 : vector<8x128xf32>
    %c0_14 = arith.constant 0 : index
    %c0_15 = arith.constant 0 : index
    %37 = vector.load %arg6[%c0_14, %c0_15] : memref<8x128xf32, #tpu.memory_space<vmem>>, vector<8x128xf32>
    tpu.vector_store %arg6[%c0_14, %c0_15], %36 {strides = array<i32>} : memref<8x128xf32, #tpu.memory_space<vmem>>, vector<8x128xf32>,
    %c0_i32_16 = arith.constant 0 : i32
    %38 = arith.cmpi eq, %arg1, %c0_i32_16 : i32
    %39 = arith.extui %38 : i1 to i32
    %c0_i32_17 = arith.constant 0 : i32
    %40 = arith.cmpi ne, %39, %c0_i32_17 : i32
    scf.if %40 {
      %c0_18 = arith.constant 0 : index
      %c0_19 = arith.constant 0 : index
      %41 = vector.load %arg5[%c0_18, %c0_19] : memref<8x128xf32, #tpu.memory_space<vmem>>, vector<8x128xf32>
      %cst_20 = arith.constant dense<0.000000e+00> : vector<128xf32>
      %42 = vector.multi_reduction <add>, %41, %cst_20 [0] : vector<8x128xf32> to vector<128xf32>
      %43 = vector.shape_cast %42 : vector<128xf32> to vector<1x128xf32>
      %c0_21 = arith.constant 0 : index
      %c0_22 = arith.constant 0 : index
      %44 = vector.load %arg6[%c0_21, %c0_22] : memref<8x128xf32, #tpu.memory_space<vmem>>, vector<8x128xf32>
      %cst_23 = arith.constant dense<0.000000e+00> : vector<128xf32>
      %45 = vector.multi_reduction <add>, %44, %cst_23 [0] : vector<8x128xf32> to vector<128xf32>
      %46 = vector.shape_cast %45 : vector<128xf32> to vector<1x128xf32>
      %cst_24 = arith.constant 1.000000e+00 : f32
      %47 = vector.broadcast %cst_24 : f32 to vector<1x128xf32>
      %48 = arith.addf %47, %43 : vector<1x128xf32>
      %49 = math.log %48 : vector<1x128xf32>
      %c0_25 = arith.constant 0 : index
      %c0_26 = arith.constant 0 : index
      %50 = vector.load %arg4[%c0_25, %c0_26] : memref<2x128xf32, #tpu.memory_space<vmem>>, vector<1x128xf32>
      tpu.vector_store %arg4[%c0_25, %c0_26], %49 {strides = array<i32>} : memref<2x128xf32, #tpu.memory_space<vmem>>, vector<1x128xf32>,
      %cst_27 = arith.constant 1.000000e+00 : f32
      %51 = vector.broadcast %cst_27 : f32 to vector<1x128xf32>
      %52 = arith.addf %51, %46 : vector<1x128xf32>
      %53 = math.log %52 : vector<1x128xf32>
      %c1 = arith.constant 1 : index
      %c0_28 = arith.constant 0 : index
      %54 = vector.load %arg4[%c1, %c0_28] : memref<2x128xf32, #tpu.memory_space<vmem>>, vector<1x128xf32>
      tpu.vector_store %arg4[%c1, %c0_28], %53 {strides = array<i32>} : memref<2x128xf32, #tpu.memory_space<vmem>>, vector<1x128xf32>,
    } else {
    }
    return
  }
  func.func @transform_0(%arg0: i32, %arg1: i32) -> (i32, i32) {
    %c0_i32 = arith.constant 0 : i32
    return %arg1, %arg0 : i32, i32
  }
  func.func @transform_1(%arg0: i32, %arg1: i32) -> (i32, i32) {
    %c0_i32 = arith.constant 0 : i32
    return %arg1, %arg0 : i32, i32
  }
  func.func @transform_2(%arg0: i32, %arg1: i32) -> (i32, i32) {
    %c0_i32 = arith.constant 0 : i32
    %c0_i32_0 = arith.constant 0 : i32
    return %c0_i32, %arg0 : i32, i32
  }
}

</mosaic_0001>

<llo_original>
// kernel: tpu_custom_call.1
$region0: #{tpu_custom_call.1}
  #allocation0 [shape = 'u32[]', space=smem, size = 0x4, offset = 0x4, fixed_abs, tag = 'smem constant byte address 0x4 - core index']
  #allocation1 [shape = 'u32[144,128]{1,0:T(1,128)}', space=vmem, size = 0x12000, scoped, tag = 'internal scratch']
  #allocation2 [shape = 'f32[8,128]{1,0:T(8,128)}', space=vmem, size = 0x1000, scoped, tag = 'scratch operand']
  #allocation3 [shape = 'f32[8,128]{1,0:T(8,128)}', space=vmem, size = 0x1000, scoped, tag = 'scratch operand']
  %s0 = inlined_call_operand.hbm [shape: f32[16,128], index: 0, kind: input, shape index: {}]
  %s1 = inlined_call_operand.hbm [shape: bf16[16,128], index: 1, kind: input, shape index: {}]
  %s2 = inlined_call_operand.hbm [shape: f32[2,128], index: 2, kind: output, shape index: {}]
  %s3 = sld [smem:[#allocation0]]
  $region34: #{tpu_custom_call.1} parent=0
    _
  %s5 = ssub.s32 1, %s3
  %s6 = scalar_select 0, %s5, %s3
  $region1: #{tpu_custom_call.1} parent=0
    #allocation4 [shape = 'u8[8192]{0}', space=vmem, size = 0x2000, scoped, tag = 'input window, operand 0, single buffered']
    #allocation5 [shape = 's32[1]{0}', space=sflag, size = 0x4, scoped, tag = 'scoped memory for tpu_custom_call.1']
    #allocation6 [shape = 's32[1]{0}', space=sflag, size = 0x4, scoped, tag = 'scoped memory for tpu_custom_call.1']
    #allocation7 [shape = 'u8[4096]{0}', space=vmem, size = 0x1000, scoped, tag = 'input window, operand 1, single buffered']
    #allocation8 [shape = 's32[1]{0}', space=sflag, size = 0x4, scoped, tag = 'scoped memory for tpu_custom_call.1']
    #allocation9 [shape = 'u8[1024]{0}', space=vmem, size = 0x400, scoped, tag = 'output window, operand 0, single buffered']
    %7 = vsyncpa [#allocation5], 0
    %8 = vsyncpa [#allocation8], 0
    %9 = vsyncpa [#allocation6], 0
    // Predicated region
    $region2: #{tpu_custom_call.1} parent=1 // pred_check
      _
    $region3: #{tpu_custom_call.1} parent=1 // pred_check_branch
      %11 = sbr.rel (0) target = $region5
    $region4: #{tpu_custom_call.1} parent=1 // pred_region
      %s13 = ssub.s32 256, 256
      %14 = vsyncadd [#allocation5], %s13
      %s15 = sshll.u32 [#allocation4], 4
      %s16 = int_to_ptr.vmem [resolvable:$true] %s15
      %21 = dma.hbm_to_vmem [thread:$0]  %s0, 256, %s16, [#allocation5], 128, 128, 8
    $region5: #{tpu_custom_call.1} parent=1 // pred_fallthru
      _
    // Predicated region
    $region6: #{tpu_custom_call.1} parent=1 // pred_check
      _
    $region7: #{tpu_custom_call.1} parent=1 // pred_check_branch
      %23 = sbr.rel (0) target = $region9
    $region8: #{tpu_custom_call.1} parent=1 // pred_region
      %s25 = ssub.s32 128, 128
      %26 = vsyncadd [#allocation8], %s25
      %s27 = sshll.u32 [#allocation7], 4
      %s28 = int_to_ptr.vmem [resolvable:$true] %s27
      %33 = dma.hbm_to_vmem [thread:$0]  %s1, 128, %s28, [#allocation8], 64, 64, 4
    $region9: #{tpu_custom_call.1} parent=1 // pred_fallthru
      _
    // Predicated region
    $region10: #{tpu_custom_call.1} parent=1 // pred_check
      _
    $region11: #{tpu_custom_call.1} parent=1 // pred_check_branch
      %35 = sbr.rel (0) target = $region13
    $region12: #{tpu_custom_call.1} parent=1 // pred_region
      %36 = dma.done [#allocation5], 256
    $region13: #{tpu_custom_call.1} parent=1 // pred_fallthru
      _
    // Predicated region
    $region14: #{tpu_custom_call.1} parent=1 // pred_check
      _
    $region15: #{tpu_custom_call.1} parent=1 // pred_check_branch
      %38 = sbr.rel (0) target = $region17
    $region16: #{tpu_custom_call.1} parent=1 // pred_region
      %39 = dma.done [#allocation8], 128
    $region17: #{tpu_custom_call.1} parent=1 // pred_fallthru
      _
    %p40 = scmp.eq.s32.totalorder 0, 0
    // Predicated region
    $region18: #{tpu_custom_call.1} parent=1 // pred_check
      %p41 = pneg %p40
    $region19: #{tpu_custom_call.1} parent=1 // pred_check_branch
      %43 = sbr.rel (%p41) target = $region21
    $region20: #{tpu_custom_call.1} parent=1 // pred_region
      %44 = vst [vmem:[#allocation2] sm:$0xff] 0.0
      %45 = vst [vmem:[#allocation3] sm:$0xff] 0.0
    $region21: #{tpu_custom_call.1} parent=1 // pred_fallthru
      _
    %v46 = vld [vmem:[#allocation4] sm:$0xff]
    %v47 = vld [vmem:[#allocation4 + $0x8] sm:$0xff]
    %v48 = vld [vmem:[#allocation7] sm:$0xf]
    %v49 = vld [vmem:[#allocation7 + $0x4] sm:$0xf]
    %v50 = vunpack.c.l.bf16 %v48
    %v51 = vunpack.c.l.bf16 %v49
    %v52 = vsub.f32 1.0, %v50
    %v53 = vsub.f32 1.0, %v51
    %v54 = vlaneseq
    %v55 = vshrl.u32 %v54, 7
    %v56 = vadd.s32 %v55, 8
    %s57 = smul.u32 0, 16
    %v58 = vstv %s57
    %v59 = vadd.s32 %v55, %v58
    %v60 = vadd.s32 %v56, %v58
    %vm61 = vcmp.lt.s32.totalorder %v59, 12
    %vm62 = vcmp.lt.s32.totalorder %v60, 12
    %v63 = vsel %vm61, %v52, 0.0
    %v64 = vsel %vm62, %v53, 0.0
    %v65 = vadd.f32 %v46, 0.1
    %v66 = vadd.f32 %v47, 0.1
    %v67 = vmul.f32 %v65, 16.0
    %v68 = vmul.f32 %v66, 16.0
    %v69 = vmul.f32 %v67, 1.442695
    %v70 = vpow.pop %v69
    %v71 = vmul.f32 %v68, 1.442695
    %v72 = vpow.pop %v71
    %v73 = vmul.f32 %v63, %v70
    %v74 = vmul.f32 %v64, %v72
    %v75 = vrcp.pop %v70
    %v76 = vrcp.pop %v72
    %v77 = vmul.f32 %v75, 24.53253
    %v78 = vmul.f32 %v76, 24.53253
    %v79 = vmul.f32 %v50, %v77
    %v80 = vmul.f32 %v51, %v78
    %v81 = vadd.f32 %v79, %v80
    %v82 = vadd.f32 %v73, %v74
    %v83 = vld [vmem:[#allocation2] sm:$0xff]
    %v84 = vadd.f32 %v83, %v81
    %85 = vst [vmem:[#allocation2] sm:$0xff] %v84
    %v86 = vld [vmem:[#allocation3] sm:$0xff]
    %v87 = vadd.f32 %v86, %v82
    %88 = vst [vmem:[#allocation3] sm:$0xff] %v87
    // Predicated region
    $region22: #{tpu_custom_call.1} parent=1 // pred_check
      %p89 = pneg %p40
    $region23: #{tpu_custom_call.1} parent=1 // pred_check_branch
      %91 = sbr.rel (%p89) target = $region25
    $region24: #{tpu_custom_call.1} parent=1 // pred_region
      %v92 = vld [vmem:[#allocation2] sm:$0xff]
      %v93 = vrot.slane %v92, 4
      %v94 = vadd.f32 %v92, %v93
      %v95 = vrot.slane %v94, 2
      %v96 = vadd.f32 %v94, %v95
      %v97 = vrot.slane %v96, 1
      %v98 = vadd.f32 %v96, %v97
      %v99 = vld [vmem:[#allocation3] sm:$0xff]
      %v100 = vrot.slane %v99, 4
      %v101 = vadd.f32 %v99, %v100
      %v102 = vrot.slane %v101, 2
      %v103 = vadd.f32 %v101, %v102
      %v104 = vrot.slane %v103, 1
      %v105 = vadd.f32 %v103, %v104
      %v106 = vadd.f32 %v98, 1.0
      %v107 = vlog2.pop %v106
      %v108 = vmul.f32 %v107, 0.6931472
      %109 = vst [vmem:[#allocation9] sm:$0x1] %v108
      %v110 = vadd.f32 %v105, 1.0
      %v111 = vlog2.pop %v110
      %v112 = vmul.f32 %v111, 0.6931472
      %113 = vst [vmem:[#allocation9 + $0x1] sm:$0x1] %v112
    $region25: #{tpu_custom_call.1} parent=1 // pred_fallthru
      _
    // Predicated region
    $region26: #{tpu_custom_call.1} parent=1 // pred_check
      _
    $region27: #{tpu_custom_call.1} parent=1 // pred_check_branch
      %115 = sbr.rel (0) target = $region29
    $region28: #{tpu_custom_call.1} parent=1 // pred_region
      %s117 = ssub.s32 32, 32
      %118 = vsyncadd [#allocation6], %s117
      %s120 = sshll.u32 [#allocation9], 4
      %s121 = int_to_ptr.vmem [resolvable:$true] %s120
      %123 = dma.vmem_to_hbm [thread:$0]  %s121, 32, %s2, [#allocation6]
    $region29: #{tpu_custom_call.1} parent=1 // pred_fallthru
      _
    // Predicated region
    $region30: #{tpu_custom_call.1} parent=1 // pred_check
      _
    $region31: #{tpu_custom_call.1} parent=1 // pred_check_branch
      %125 = sbr.rel (0) target = $region33
    $region32: #{tpu_custom_call.1} parent=1 // pred_region
      %126 = dma.done [#allocation6], 32
    $region33: #{tpu_custom_call.1} parent=1 // pred_fallthru
      _
    %127 = vsyncpa [#allocation5], 1
    %128 = vsyncpa [#allocation8], 1
    %129 = vsyncpa [#allocation6], 1

</llo_original>
